<compile_context>
chip_gen: v7x
topology: tpu7x:2x2x1
jax: 0.10.0
libtpu: 0.0.40
codegen_flags: <defaults>
</compile_context>

<pallas_src>
import jax
import jax.numpy as jnp
from jax.experimental import pallas as pl
from jax.experimental.pallas import tpu as pltpu

H = 32    # hidden_size
V = 64    # output_size (vocab)
M = 8     # max_length (encoder positions)
L = 1     # num_layers
T = 8     # decode steps folded into one kernel launch

OUT_W = 128                      # packed per-step output row: [logp | h | attn | pad]
OUT_PAD = OUT_W - (V + H + M)    # 24
CO_PAD = 128 - (H + V)           # 32 (pad lanes of the cat-side weight slab)


def decoder_kernel(tok_ref,                       # scalar prefetch: (T,) int32 in SMEM
                   emb_ref, enc_ref, h0_ref,      # (V,H) f32, (M,H) f32, (1,H) f32
                   Wh_ref, bh_ref,                # (H,4H) bf16, (1,4H) f32
                   Wxu_ref, bxu_ref,              # (H,4H) bf16, (1,4H) f32
                   Wco_ref, bco_ref,              # (2H,128) bf16, (1,128) f32
                   v_ref,                         # (1,H) f32
                   out_ref,                       # (1,1,128) f32 block (per-step row)
                   h_scr, uv_scr):                # VMEM scratch: (1,H), (M,H) f32
    f32 = jnp.float32
    t = pl.program_id(0)

    Wxu = Wxu_ref[...].astype(f32)

    @pl.when(t == 0)
    def _init():
        h_scr[...] = h0_ref[...]
        # Hoisted, step-invariant attention key projection: uv = enc @ U_w + U_b
        uv_full = jnp.dot(enc_ref[...], Wxu, preferred_element_type=f32) + bxu_ref[...]
        uv_scr[...] = uv_full[:, 0:H]

    h = h_scr[...]                                    # (1, H) previous hidden
    tok = tok_ref[t]
    emb = emb_ref[pl.ds(tok, 1), :]                   # (1, H) embedded token (dropout == id)

    # ---- packed h-side projection: [wq | gh_r | gh_z | gh_n] ----
    hv = jnp.dot(h, Wh_ref[...].astype(f32), preferred_element_type=f32) + bh_ref[...]
    wq = hv[:, 0:H]

    # ---- additive attention: scores = tanh(W q + U vals) @ v, softmax over M ----
    e = jnp.tanh(wq + uv_scr[...])                    # (M, H)
    scores = jax.lax.dot_general(v_ref[...], e, (((1,), (1,)), ((), ())),
                                 preferred_element_type=f32)          # (1, M)
    smax = jnp.max(scores, axis=1, keepdims=True)
    p = jnp.exp(scores - smax)
    attn = p * pl.reciprocal(jnp.sum(p, axis=1, keepdims=True), approx=True)
    attn_applied = jnp.dot(attn, enc_ref[...], preferred_element_type=f32)   # (1, H)

    # ---- attn_combine(cat(embedded, attn_applied)) + ReLU (fused cat-matmul) ----
    cat_ea = jnp.concatenate([emb, attn_applied], axis=1)             # (1, 2H)
    comb_full = jnp.dot(cat_ea, Wco_ref[...].astype(f32),
                        preferred_element_type=f32) + bco_ref[...]    # (1, 128)
    x = jnp.maximum(comb_full[:, 0:H], 0.0)

    # ---- single GRU step (torch gate order r, z, n) ----
    g_full = jnp.dot(x, Wxu, preferred_element_type=f32) + bxu_ref[...]   # (1, 4H)
    gi_r, gi_z, gi_n = g_full[:, H:2 * H], g_full[:, 2 * H:3 * H], g_full[:, 3 * H:4 * H]
    gh_r, gh_z, gh_n = hv[:, H:2 * H], hv[:, 2 * H:3 * H], hv[:, 3 * H:4 * H]
    r = jax.nn.sigmoid(gi_r + gh_r)
    z = jax.nn.sigmoid(gi_z + gh_z)
    n = jnp.tanh(gi_n + r * gh_n)
    h_new = (1.0 - z) * n + z * h
    h_scr[...] = h_new                                                # carry to next step

    # ---- out2(cat(h_new, attn_applied)) + log_softmax (fused cat-matmul) ----
    cat_ha = jnp.concatenate([h_new, attn_applied], axis=1)
    out_full = jnp.dot(cat_ha, Wco_ref[...].astype(f32),
                       preferred_element_type=f32) + bco_ref[...]
    logits = out_full[:, H:H + V]
    lmax = jnp.max(logits, axis=1, keepdims=True)
    shifted = logits - lmax
    logp = shifted - jnp.log(jnp.sum(jnp.exp(shifted), axis=1, keepdims=True))

    # lane-dense packed output row: [logp(64) | h_new(32) | attn(8) | pad(24)]
    out_ref[0] = jnp.concatenate(
        [logp, h_new, attn, jnp.zeros((1, OUT_PAD), f32)], axis=1)


def init_params(key):
    ks = jax.random.split(key, 16)

    def u(k, shape, scale=0.1):
        return jax.random.uniform(k, shape, jnp.float32, -scale, scale)

    return dict(
        embedding=u(ks[0], (V, H)),
        W_w=u(ks[1], (H, H)), W_b=u(ks[2], (1, H)),        # self.W
        U_w=u(ks[3], (H, H)), U_b=u(ks[4], (1, H)),        # self.U
        v=u(ks[5], (1, H)),                                # self.v
        cw_e=u(ks[6], (H, H)), cw_a=u(ks[7], (H, H)),      # attn_combine, split over cat
        c_b=u(ks[8], (1, H)),
        gru_wih=u(ks[9], (3, H, H)), gru_whh=u(ks[10], (3, H, H)),   # (r, z, n)
        gru_bih=u(ks[11], (3, 1, H)), gru_bhh=u(ks[12], (3, 1, H)),
        o2w_h=u(ks[13], (H, V)), o2w_a=u(ks[14], (H, V)),  # out2, split over cat
        o2_b=u(ks[15], (1, V)),
    )


def pack_params(p):
    """Pack weights into lane-dense slabs; matmul operands stored as bf16, biases f32."""
    f32, bf16 = jnp.float32, jnp.bfloat16
    Wh = jnp.concatenate([p['W_w'], p['gru_whh'][0], p['gru_whh'][1], p['gru_whh'][2]], axis=1)
    bh = jnp.concatenate([p['W_b'], p['gru_bhh'][0], p['gru_bhh'][1], p['gru_bhh'][2]], axis=1)
    Wxu = jnp.concatenate([p['U_w'], p['gru_wih'][0], p['gru_wih'][1], p['gru_wih'][2]], axis=1)
    bxu = jnp.concatenate([p['U_b'], p['gru_bih'][0], p['gru_bih'][1], p['gru_bih'][2]], axis=1)
    Wc = jnp.concatenate([p['cw_e'], p['cw_a']], axis=0)              # (2H, H)
    Wo = jnp.concatenate([p['o2w_h'], p['o2w_a']], axis=0)            # (2H, V)
    Wco = jnp.concatenate([Wc, Wo, jnp.zeros((2 * H, CO_PAD), f32)], axis=1)   # (2H, 128)
    bco = jnp.concatenate([p['c_b'], p['o2_b'], jnp.zeros((1, CO_PAD), f32)], axis=1)
    return dict(
        emb=p['embedding'].astype(f32),
        Wh=Wh.astype(bf16), bh=bh.astype(f32),
        Wxu=Wxu.astype(bf16), bxu=bxu.astype(f32),
        Wco=Wco.astype(bf16), bco=bco.astype(f32),
        v=p['v'].astype(f32),
    )


@jax.jit
def attn_decoder_decode(packed, token_ids, hidden, encoder_outputs):
    """T sequential forward() steps of AttnDecoder_layer_GRU in a single pallas_call.

    Returns (log_probs (T,V), final hidden (L,1,H), attn_weights (T,M))."""
    f32 = jnp.float32
    steps = token_ids.shape[0]
    h0 = hidden.reshape(1, H).astype(f32)
    enc = encoder_outputs.astype(f32)

    def resident(shape):
        # whole array VMEM-resident across every grid step (DMA'd once)
        return pl.BlockSpec(shape, lambda t, tok: (0,) * len(shape))

    inputs = (packed['emb'], enc, h0,
              packed['Wh'], packed['bh'],
              packed['Wxu'], packed['bxu'],
              packed['Wco'], packed['bco'],
              packed['v'])

    grid_spec = pltpu.PrefetchScalarGridSpec(
        num_scalar_prefetch=1,                       # token ids -> SMEM
        grid=(steps,),
        in_specs=[resident(a.shape) for a in inputs],
        out_specs=pl.BlockSpec((1, 1, OUT_W), lambda t, tok: (t, 0, 0)),
        scratch_shapes=[pltpu.VMEM((1, H), f32),     # carried hidden state
                        pltpu.VMEM((M, H), f32)],    # hoisted uv = enc @ U_w + U_b
    )

    out = pl.pallas_call(
        decoder_kernel,
        out_shape=jax.ShapeDtypeStruct((steps, 1, OUT_W), f32),
        grid_spec=grid_spec,
        compiler_params=pltpu.CompilerParams(
            dimension_semantics=("arbitrary",)),     # sequential: state carried in scratch
    )(token_ids.astype(jnp.int32), *inputs)

    out = out.reshape(steps, OUT_W)
    logp = out[:, :V]
    h_seq = out[:, V:V + H]
    attn = out[:, V + H:V + H + M]
    return logp, h_seq[-1].reshape(L, 1, H), attn


def reference_decode(packed, token_ids, hidden, encoder_outputs):
    """Pure-JAX mirror of T sequential PyTorch forward() calls (eval mode), using the
    same (bf16-rounded) packed weights as the kernel."""
    f32 = jnp.float32
    Wh, bh = packed['Wh'].astype(f32), packed['bh']
    Wxu, bxu = packed['Wxu'].astype(f32), packed['bxu']
    Wco, bco = packed['Wco'].astype(f32), packed['bco']
    vv, emb_tbl = packed['v'], packed['emb']
    enc = encoder_outputs.astype(f32)
    h = hidden.reshape(1, H).astype(f32)

    W_w, Whh = Wh[:, :H], (Wh[:, H:2 * H], Wh[:, 2 * H:3 * H], Wh[:, 3 * H:])
    W_b, bhh = bh[:, :H], (bh[:, H:2 * H], bh[:, 2 * H:3 * H], bh[:, 3 * H:])
    U_w, Wih = Wxu[:, :H], (Wxu[:, H:2 * H], Wxu[:, 2 * H:3 * H], Wxu[:, 3 * H:])
    U_b, bih = bxu[:, :H], (bxu[:, H:2 * H], bxu[:, 2 * H:3 * H], bxu[:, 3 * H:])
    Wc, c_b = Wco[:, :H], bco[:, :H]
    Wo, o_b = Wco[:, H:H + V], bco[:, H:H + V]

    uv = enc @ U_w + U_b
    logps, attns = [], []
    for t in range(token_ids.shape[0]):
        emb = emb_tbl[token_ids[t]][None, :]
        scores = (jnp.tanh(h @ W_w + W_b + uv) @ vv[0]).reshape(1, M)
        attn = jax.nn.softmax(scores, axis=1)
        attn_applied = attn @ enc
        x = jax.nn.relu(jnp.concatenate([emb, attn_applied], axis=1) @ Wc + c_b)
        r = jax.nn.sigmoid(x @ Wih[0] + bih[0] + h @ Whh[0] + bhh[0])
        z = jax.nn.sigmoid(x @ Wih[1] + bih[1] + h @ Whh[1] + bhh[1])
        n = jnp.tanh(x @ Wih[2] + bih[2] + r * (h @ Whh[2] + bhh[2]))
        h = (1.0 - z) * n + z * h
        logits = jnp.concatenate([h, attn_applied], axis=1) @ Wo + o_b
        logps.append(jax.nn.log_softmax(logits, axis=1))
        attns.append(attn)
    return jnp.concatenate(logps, axis=0), h.reshape(L, 1, H), jnp.concatenate(attns, axis=0)


if __name__ == "__main__":
    key = jax.random.PRNGKey(0)
    kp, ke, kh, kt = jax.random.split(key, 4)
    params = init_params(kp)
    packed = pack_params(params)

    token_ids = jax.random.randint(kt, (T,), 0, V, jnp.int32)              # decoder tokens
    hidden = jax.random.normal(kh, (L, 1, H), jnp.float32) * 0.1           # (num_layers,1,H)
    encoder_outputs = jax.random.normal(ke, (M, H), jnp.float32) * 0.1     # (max_length,H)

    logp, h_final, attn = attn_decoder_decode(packed, token_ids, hidden, encoder_outputs)
    jax.block_until_ready((logp, h_final, attn))

    logp_r, h_r, attn_r = reference_decode(packed, token_ids, hidden, encoder_outputs)
    assert logp.shape == (T, V) and h_final.shape == (L, 1, H) and attn.shape == (T, M)
    assert jnp.allclose(logp, logp_r, rtol=1e-2, atol=1e-2), float(jnp.max(jnp.abs(logp - logp_r)))
    assert jnp.allclose(h_final, h_r, rtol=1e-2, atol=1e-2), float(jnp.max(jnp.abs(h_final - h_r)))
    assert jnp.allclose(attn, attn_r, rtol=1e-2, atol=1e-2), float(jnp.max(jnp.abs(attn - attn_r)))
    assert jnp.allclose(jnp.sum(attn, axis=1), 1.0, atol=1e-2)

    print("KERNEL_OK")
</pallas_src>

<mosaic_0001>
module attributes {stable_mosaic.version = 11 : i64} {
  func.func @decoder_kernel(%arg0: i32, %arg1: memref<8xi32, #tpu.memory_space<smem>>, %arg2: memref<64x32xf32, #tpu.memory_space<vmem>>, %arg3: memref<8x32xf32, #tpu.memory_space<vmem>>, %arg4: memref<1x32xf32, #tpu.memory_space<vmem>>, %arg5: memref<32x128xbf16, #tpu.memory_space<vmem>>, %arg6: memref<1x128xf32, #tpu.memory_space<vmem>>, %arg7: memref<32x128xbf16, #tpu.memory_space<vmem>>, %arg8: memref<1x128xf32, #tpu.memory_space<vmem>>, %arg9: memref<64x128xbf16, #tpu.memory_space<vmem>>, %arg10: memref<1x128xf32, #tpu.memory_space<vmem>>, %arg11: memref<1x32xf32, #tpu.memory_space<vmem>>, %arg12: memref<1x1x128xf32, #tpu.memory_space<vmem>>, %arg13: memref<1x32xf32, #tpu.memory_space<vmem>>, %arg14: memref<8x32xf32, #tpu.memory_space<vmem>>) attributes {dimension_semantics = [#tpu.dimension_semantics<arbitrary>], iteration_bounds = array<i64: 8>, scalar_prefetch = 1 : i64, scratch_operands = 2 : i64, tpu.core_type = #tpu.core_type<tc>, window_params = [{pipeline_mode = #tpu.pipeline_mode<synchronous>, transform_indices = @transform_0, window_bounds = array<i64: 64, 32>}, {pipeline_mode = #tpu.pipeline_mode<synchronous>, transform_indices = @transform_1, window_bounds = array<i64: 8, 32>}, {pipeline_mode = #tpu.pipeline_mode<synchronous>, transform_indices = @transform_2, window_bounds = array<i64: 1, 32>}, {pipeline_mode = #tpu.pipeline_mode<synchronous>, transform_indices = @transform_3, window_bounds = array<i64: 32, 128>}, {pipeline_mode = #tpu.pipeline_mode<synchronous>, transform_indices = @transform_4, window_bounds = array<i64: 1, 128>}, {pipeline_mode = #tpu.pipeline_mode<synchronous>, transform_indices = @transform_5, window_bounds = array<i64: 32, 128>}, {pipeline_mode = #tpu.pipeline_mode<synchronous>, transform_indices = @transform_6, window_bounds = array<i64: 1, 128>}, {pipeline_mode = #tpu.pipeline_mode<synchronous>, transform_indices = @transform_7, window_bounds = array<i64: 64, 128>}, {pipeline_mode = #tpu.pipeline_mode<synchronous>, transform_indices = @transform_8, window_bounds = array<i64: 1, 128>}, {pipeline_mode = #tpu.pipeline_mode<synchronous>, transform_indices = @transform_9, window_bounds = array<i64: 1, 32>}, {transform_indices = @transform_10, window_bounds = array<i64: 1, 1, 128>}]} {
    %c0 = arith.constant 0 : index
    %c0_0 = arith.constant 0 : index
    %0 = vector.load %arg7[%c0, %c0_0] : memref<32x128xbf16, #tpu.memory_space<vmem>>, vector<32x128xbf16>
    %1 = arith.extf %0 : vector<32x128xbf16> to vector<32x128xf32>
    %c0_i32 = arith.constant 0 : i32
    %2 = arith.cmpi eq, %arg0, %c0_i32 : i32
    %3 = arith.extui %2 : i1 to i32
    %c0_i32_1 = arith.constant 0 : i32
    %4 = arith.cmpi ne, %3, %c0_i32_1 : i32
    scf.if %4 {
      %c0_44 = arith.constant 0 : index
      %c0_45 = arith.constant 0 : index
      %95 = vector.load %arg4[%c0_44, %c0_45] : memref<1x32xf32, #tpu.memory_space<vmem>>, vector<1x32xf32>
      %c0_46 = arith.constant 0 : index
      %c0_47 = arith.constant 0 : index
      %96 = vector.load %arg13[%c0_46, %c0_47] : memref<1x32xf32, #tpu.memory_space<vmem>>, vector<1x32xf32>
      tpu.vector_store %arg13[%c0_46, %c0_47], %95 {strides = array<i32>} : memref<1x32xf32, #tpu.memory_space<vmem>>, vector<1x32xf32>,
      %c0_48 = arith.constant 0 : index
      %c0_49 = arith.constant 0 : index
      %97 = vector.load %arg3[%c0_48, %c0_49] : memref<8x32xf32, #tpu.memory_space<vmem>>, vector<8x32xf32>
      %cst_50 = arith.constant dense<0.000000e+00> : vector<8x128xf32>
      %98 = tpu.matmul %97, %1, %cst_50 {dimension_numbers = #tpu.dot_dimension_numbers<[1], [0], [0], [1], [0, 0, 1, 1], [], []>} : vector<8x32xf32>, vector<32x128xf32>, vector<8x128xf32> -> vector<8x128xf32>
      %c0_51 = arith.constant 0 : index
      %c0_52 = arith.constant 0 : index
      %99 = vector.load %arg8[%c0_51, %c0_52] : memref<1x128xf32, #tpu.memory_space<vmem>>, vector<1x128xf32>
      %100 = vector.broadcast %99 : vector<1x128xf32> to vector<8x128xf32>
      %101 = arith.addf %98, %100 : vector<8x128xf32>
      %102 = vector.extract_strided_slice %101 {offsets = [0, 0], sizes = [8, 32], strides = [1, 1]} : vector<8x128xf32> to vector<8x32xf32>
      %c0_53 = arith.constant 0 : index
      %c0_54 = arith.constant 0 : index
      %103 = vector.load %arg14[%c0_53, %c0_54] : memref<8x32xf32, #tpu.memory_space<vmem>>, vector<8x32xf32>
      tpu.vector_store %arg14[%c0_53, %c0_54], %102 {strides = array<i32>} : memref<8x32xf32, #tpu.memory_space<vmem>>, vector<8x32xf32>,
    } else {
    }
    %c0_2 = arith.constant 0 : index
    %c0_3 = arith.constant 0 : index
    %5 = vector.load %arg13[%c0_2, %c0_3] : memref<1x32xf32, #tpu.memory_space<vmem>>, vector<1x32xf32>
    %6 = arith.index_cast %arg0 : i32 to index
    %7 = memref.load %arg1[%6] : memref<8xi32, #tpu.memory_space<smem>>
    %8 = arith.index_cast %7 : i32 to index
    %c0_4 = arith.constant 0 : index
    %9 = vector.load %arg2[%8, %c0_4] : memref<64x32xf32, #tpu.memory_space<vmem>>, vector<1x32xf32>
    %c0_5 = arith.constant 0 : index
    %c0_6 = arith.constant 0 : index
    %10 = vector.load %arg5[%c0_5, %c0_6] : memref<32x128xbf16, #tpu.memory_space<vmem>>, vector<32x128xbf16>
    %11 = arith.extf %10 : vector<32x128xbf16> to vector<32x128xf32>
    %cst = arith.constant dense<0.000000e+00> : vector<1x128xf32>
    %12 = tpu.matmul %5, %11, %cst {dimension_numbers = #tpu.dot_dimension_numbers<[1], [0], [0], [1], [0, 0, 1, 1], [], []>} : vector<1x32xf32>, vector<32x128xf32>, vector<1x128xf32> -> vector<1x128xf32>
    %c0_7 = arith.constant 0 : index
    %c0_8 = arith.constant 0 : index
    %13 = vector.load %arg6[%c0_7, %c0_8] : memref<1x128xf32, #tpu.memory_space<vmem>>, vector<1x128xf32>
    %14 = arith.addf %12, %13 : vector<1x128xf32>
    %15 = vector.extract_strided_slice %14 {offsets = [0, 0], sizes = [1, 32], strides = [1, 1]} : vector<1x128xf32> to vector<1x32xf32>
    %c0_9 = arith.constant 0 : index
    %c0_10 = arith.constant 0 : index
    %16 = vector.load %arg14[%c0_9, %c0_10] : memref<8x32xf32, #tpu.memory_space<vmem>>, vector<8x32xf32>
    %17 = vector.broadcast %15 : vector<1x32xf32> to vector<8x32xf32>
    %18 = arith.addf %17, %16 : vector<8x32xf32>
    %19 = math.tanh %18 : vector<8x32xf32>
    %c0_11 = arith.constant 0 : index
    %c0_12 = arith.constant 0 : index
    %20 = vector.load %arg11[%c0_11, %c0_12] : memref<1x32xf32, #tpu.memory_space<vmem>>, vector<1x32xf32>
    %cst_13 = arith.constant dense<0.000000e+00> : vector<1x8xf32>
    %21 = tpu.matmul %20, %19, %cst_13 {dimension_numbers = #tpu.dot_dimension_numbers<[1], [1], [0], [0], [0, 0, 1, 0], [], []>} : vector<1x32xf32>, vector<8x32xf32>, vector<1x8xf32> -> vector<1x8xf32>
    %cst_14 = arith.constant dense<0xFF800000> : vector<1xf32>
    %22 = vector.multi_reduction <maximumf>, %21, %cst_14 [1] : vector<1x8xf32> to vector<1xf32>
    %23 = vector.shape_cast %22 : vector<1xf32> to vector<1x1xf32>
    %24 = vector.broadcast %23 : vector<1x1xf32> to vector<1x8xf32>
    %25 = arith.subf %21, %24 : vector<1x8xf32>
    %26 = math.exp %25 : vector<1x8xf32>
    %cst_15 = arith.constant dense<0.000000e+00> : vector<1xf32>
    %27 = vector.multi_reduction <add>, %26, %cst_15 [1] : vector<1x8xf32> to vector<1xf32>
    %28 = vector.shape_cast %27 : vector<1xf32> to vector<1x1xf32>
    %29 = tpu.reciprocal %28 {approx = true} : vector<1x1xf32> -> vector<1x1xf32>
    %30 = vector.broadcast %29 : vector<1x1xf32> to vector<1x8xf32>
    %31 = arith.mulf %26, %30 : vector<1x8xf32>
    %c0_16 = arith.constant 0 : index
    %c0_17 = arith.constant 0 : index
    %32 = vector.load %arg3[%c0_16, %c0_17] : memref<8x32xf32, #tpu.memory_space<vmem>>, vector<8x32xf32>
    %cst_18 = arith.constant dense<0.000000e+00> : vector<1x32xf32>
    %33 = tpu.matmul %31, %32, %cst_18 {dimension_numbers = #tpu.dot_dimension_numbers<[1], [0], [0], [1], [0, 0, 1, 1], [], []>} : vector<1x8xf32>, vector<8x32xf32>, vector<1x32xf32> -> vector<1x32xf32>
    %34 = tpu.concatenate %9, %33 in 1 : vector<1x32xf32>, vector<1x32xf32> -> vector<1x64xf32>
    %c0_19 = arith.constant 0 : index
    %c0_20 = arith.constant 0 : index
    %35 = vector.load %arg9[%c0_19, %c0_20] : memref<64x128xbf16, #tpu.memory_space<vmem>>, vector<64x128xbf16>
    %36 = arith.extf %35 : vector<64x128xbf16> to vector<64x128xf32>
    %cst_21 = arith.constant dense<0.000000e+00> : vector<1x128xf32>
    %37 = tpu.matmul %34, %36, %cst_21 {dimension_numbers = #tpu.dot_dimension_numbers<[1], [0], [0], [1], [0, 0, 1, 1], [], []>} : vector<1x64xf32>, vector<64x128xf32>, vector<1x128xf32> -> vector<1x128xf32>
    %c0_22 = arith.constant 0 : index
    %c0_23 = arith.constant 0 : index
    %38 = vector.load %arg10[%c0_22, %c0_23] : memref<1x128xf32, #tpu.memory_space<vmem>>, vector<1x128xf32>
    %39 = arith.addf %37, %38 : vector<1x128xf32>
    %40 = vector.extract_strided_slice %39 {offsets = [0, 0], sizes = [1, 32], strides = [1, 1]} : vector<1x128xf32> to vector<1x32xf32>
    %cst_24 = arith.constant 0.000000e+00 : f32
    %41 = vector.broadcast %cst_24 : f32 to vector<1x32xf32>
    %42 = arith.maximumf %40, %41 : vector<1x32xf32>
    %cst_25 = arith.constant dense<0.000000e+00> : vector<1x128xf32>
    %43 = tpu.matmul %42, %1, %cst_25 {dimension_numbers = #tpu.dot_dimension_numbers<[1], [0], [0], [1], [0, 0, 1, 1], [], []>} : vector<1x32xf32>, vector<32x128xf32>, vector<1x128xf32> -> vector<1x128xf32>
    %c0_26 = arith.constant 0 : index
    %c0_27 = arith.constant 0 : index
    %44 = vector.load %arg8[%c0_26, %c0_27] : memref<1x128xf32, #tpu.memory_space<vmem>>, vector<1x128xf32>
    %45 = arith.addf %43, %44 : vector<1x128xf32>
    %46 = vector.extract_strided_slice %45 {offsets = [0, 32], sizes = [1, 32], strides = [1, 1]} : vector<1x128xf32> to vector<1x32xf32>
    %47 = vector.extract_strided_slice %45 {offsets = [0, 64], sizes = [1, 32], strides = [1, 1]} : vector<1x128xf32> to vector<1x32xf32>
    %48 = vector.extract_strided_slice %45 {offsets = [0, 96], sizes = [1, 32], strides = [1, 1]} : vector<1x128xf32> to vector<1x32xf32>
    %49 = vector.extract_strided_slice %14 {offsets = [0, 32], sizes = [1, 32], strides = [1, 1]} : vector<1x128xf32> to vector<1x32xf32>
    %50 = vector.extract_strided_slice %14 {offsets = [0, 64], sizes = [1, 32], strides = [1, 1]} : vector<1x128xf32> to vector<1x32xf32>
    %51 = vector.extract_strided_slice %14 {offsets = [0, 96], sizes = [1, 32], strides = [1, 1]} : vector<1x128xf32> to vector<1x32xf32>
    %52 = arith.addf %46, %49 : vector<1x32xf32>
    %53 = arith.negf %52 : vector<1x32xf32>
    %54 = math.exp %53 : vector<1x32xf32>
    %cst_28 = arith.constant 1.000000e+00 : f32
    %55 = vector.broadcast %cst_28 : f32 to vector<1x32xf32>
    %56 = arith.addf %55, %54 : vector<1x32xf32>
    %57 = arith.divf %55, %56 : vector<1x32xf32>
    %58 = arith.addf %47, %50 : vector<1x32xf32>
    %59 = arith.negf %58 : vector<1x32xf32>
    %60 = math.exp %59 : vector<1x32xf32>
    %cst_29 = arith.constant 1.000000e+00 : f32
    %61 = vector.broadcast %cst_29 : f32 to vector<1x32xf32>
    %62 = arith.addf %61, %60 : vector<1x32xf32>
    %63 = arith.divf %61, %62 : vector<1x32xf32>
    %64 = arith.mulf %57, %51 : vector<1x32xf32>
    %65 = arith.addf %48, %64 : vector<1x32xf32>
    %66 = math.tanh %65 : vector<1x32xf32>
    %cst_30 = arith.constant 1.000000e+00 : f32
    %67 = vector.broadcast %cst_30 : f32 to vector<1x32xf32>
    %68 = arith.subf %67, %63 : vector<1x32xf32>
    %69 = arith.mulf %68, %66 : vector<1x32xf32>
    %70 = arith.mulf %63, %5 : vector<1x32xf32>
    %71 = arith.addf %69, %70 : vector<1x32xf32>
    %c0_31 = arith.constant 0 : index
    %c0_32 = arith.constant 0 : index
    %72 = vector.load %arg13[%c0_31, %c0_32] : memref<1x32xf32, #tpu.memory_space<vmem>>, vector<1x32xf32>
    tpu.vector_store %arg13[%c0_31, %c0_32], %71 {strides = array<i32>} : memref<1x32xf32, #tpu.memory_space<vmem>>, vector<1x32xf32>,
    %73 = tpu.concatenate %71, %33 in 1 : vector<1x32xf32>, vector<1x32xf32> -> vector<1x64xf32>
    %c0_33 = arith.constant 0 : index
    %c0_34 = arith.constant 0 : index
    %74 = vector.load %arg9[%c0_33, %c0_34] : memref<64x128xbf16, #tpu.memory_space<vmem>>, vector<64x128xbf16>
    %75 = arith.extf %74 : vector<64x128xbf16> to vector<64x128xf32>
    %cst_35 = arith.constant dense<0.000000e+00> : vector<1x128xf32>
    %76 = tpu.matmul %73, %75, %cst_35 {dimension_numbers = #tpu.dot_dimension_numbers<[1], [0], [0], [1], [0, 0, 1, 1], [], []>} : vector<1x64xf32>, vector<64x128xf32>, vector<1x128xf32> -> vector<1x128xf32>
    %c0_36 = arith.constant 0 : index
    %c0_37 = arith.constant 0 : index
    %77 = vector.load %arg10[%c0_36, %c0_37] : memref<1x128xf32, #tpu.memory_space<vmem>>, vector<1x128xf32>
    %78 = arith.addf %76, %77 : vector<1x128xf32>
    %79 = vector.extract_strided_slice %78 {offsets = [0, 32], sizes = [1, 64], strides = [1, 1]} : vector<1x128xf32> to vector<1x64xf32>
    %cst_38 = arith.constant dense<0xFF800000> : vector<1xf32>
    %80 = vector.multi_reduction <maximumf>, %79, %cst_38 [1] : vector<1x64xf32> to vector<1xf32>
    %81 = vector.shape_cast %80 : vector<1xf32> to vector<1x1xf32>
    %82 = vector.broadcast %81 : vector<1x1xf32> to vector<1x64xf32>
    %83 = arith.subf %79, %82 : vector<1x64xf32>
    %84 = math.exp %83 : vector<1x64xf32>
    %cst_39 = arith.constant dense<0.000000e+00> : vector<1xf32>
    %85 = vector.multi_reduction <add>, %84, %cst_39 [1] : vector<1x64xf32> to vector<1xf32>
    %86 = vector.shape_cast %85 : vector<1xf32> to vector<1x1xf32>
    %87 = math.log %86 : vector<1x1xf32>
    %88 = vector.broadcast %87 : vector<1x1xf32> to vector<1x64xf32>
    %89 = arith.subf %83, %88 : vector<1x64xf32>
    %cst_40 = arith.constant 0.000000e+00 : f32
    %90 = vector.broadcast %cst_40 : f32 to vector<1x24xf32>
    %91 = tpu.concatenate %89, %71, %31, %90 in 1 : vector<1x64xf32>, vector<1x32xf32>, vector<1x8xf32>, vector<1x24xf32> -> vector<1x128xf32>
    %c0_41 = arith.constant 0 : index
    %c0_42 = arith.constant 0 : index
    %c0_43 = arith.constant 0 : index
    %92 = vector.load %arg12[%c0_41, %c0_42, %c0_43] : memref<1x1x128xf32, #tpu.memory_space<vmem>>, vector<1x1x128xf32>
    %93 = vector.shape_cast %92 : vector<1x1x128xf32> to vector<1x128xf32>
    %94 = vector.shape_cast %91 : vector<1x128xf32> to vector<1x1x128xf32>
    tpu.vector_store %arg12[%c0_41, %c0_42, %c0_43], %94 {strides = array<i32>} : memref<1x1x128xf32, #tpu.memory_space<vmem>>, vector<1x1x128xf32>,
    return
  }
  func.func @transform_0(%arg0: i32, %arg1: memref<8xi32, #tpu.memory_space<smem>>) -> (i32, i32) {
    %c0_i32 = arith.constant 0 : i32
    %c0_i32_0 = arith.constant 0 : i32
    %c0_i32_1 = arith.constant 0 : i32
    return %c0_i32, %c0_i32_0 : i32, i32
  }
  func.func @transform_1(%arg0: i32, %arg1: memref<8xi32, #tpu.memory_space<smem>>) -> (i32, i32) {
    %c0_i32 = arith.constant 0 : i32
    %c0_i32_0 = arith.constant 0 : i32
    %c0_i32_1 = arith.constant 0 : i32
    return %c0_i32, %c0_i32_0 : i32, i32
  }
  func.func @transform_2(%arg0: i32, %arg1: memref<8xi32, #tpu.memory_space<smem>>) -> (i32, i32) {
    %c0_i32 = arith.constant 0 : i32
    %c0_i32_0 = arith.constant 0 : i32
    %c0_i32_1 = arith.constant 0 : i32
    return %c0_i32, %c0_i32_0 : i32, i32
  }
  func.func @transform_3(%arg0: i32, %arg1: memref<8xi32, #tpu.memory_space<smem>>) -> (i32, i32) {
    %c0_i32 = arith.constant 0 : i32
    %c0_i32_0 = arith.constant 0 : i32
    %c0_i32_1 = arith.constant 0 : i32
    return %c0_i32, %c0_i32_0 : i32, i32
  }
  func.func @transform_4(%arg0: i32, %arg1: memref<8xi32, #tpu.memory_space<smem>>) -> (i32, i32) {
    %c0_i32 = arith.constant 0 : i32
    %c0_i32_0 = arith.constant 0 : i32
    %c0_i32_1 = arith.constant 0 : i32
    return %c0_i32, %c0_i32_0 : i32, i32
  }
  func.func @transform_5(%arg0: i32, %arg1: memref<8xi32, #tpu.memory_space<smem>>) -> (i32, i32) {
    %c0_i32 = arith.constant 0 : i32
    %c0_i32_0 = arith.constant 0 : i32
    %c0_i32_1 = arith.constant 0 : i32
    return %c0_i32, %c0_i32_0 : i32, i32
  }
  func.func @transform_6(%arg0: i32, %arg1: memref<8xi32, #tpu.memory_space<smem>>) -> (i32, i32) {
    %c0_i32 = arith.constant 0 : i32
    %c0_i32_0 = arith.constant 0 : i32
    %c0_i32_1 = arith.constant 0 : i32
    return %c0_i32, %c0_i32_0 : i32, i32
  }
  func.func @transform_7(%arg0: i32, %arg1: memref<8xi32, #tpu.memory_space<smem>>) -> (i32, i32) {
    %c0_i32 = arith.constant 0 : i32
    %c0_i32_0 = arith.constant 0 : i32
    %c0_i32_1 = arith.constant 0 : i32
    return %c0_i32, %c0_i32_0 : i32, i32
  }
  func.func @transform_8(%arg0: i32, %arg1: memref<8xi32, #tpu.memory_space<smem>>) -> (i32, i32) {
    %c0_i32 = arith.constant 0 : i32
    %c0_i32_0 = arith.constant 0 : i32
    %c0_i32_1 = arith.constant 0 : i32
    return %c0_i32, %c0_i32_0 : i32, i32
  }
  func.func @transform_9(%arg0: i32, %arg1: memref<8xi32, #tpu.memory_space<smem>>) -> (i32, i32) {
    %c0_i32 = arith.constant 0 : i32
    %c0_i32_0 = arith.constant 0 : i32
    %c0_i32_1 = arith.constant 0 : i32
    return %c0_i32, %c0_i32_0 : i32, i32
  }
  func.func @transform_10(%arg0: i32, %arg1: memref<8xi32, #tpu.memory_space<smem>>) -> (i32, i32, i32) {
    %c0_i32 = arith.constant 0 : i32
    %c0_i32_0 = arith.constant 0 : i32
    %c0_i32_1 = arith.constant 0 : i32
    return %arg0, %c0_i32, %c0_i32_0 : i32, i32, i32
  }
}

</mosaic_0001>

<llo_original>
// kernel: attn_decoder_decode.1
$region0: #{attn_decoder_decode.1}
  #allocation0 [shape = 'u32[]', space=smem, size = 0x4, offset = 0x4, fixed_abs, tag = 'smem constant byte address 0x4 - core index']
  #allocation1 [shape = 'u32[144,128]{1,0:T(1,128)}', space=vmem, size = 0x12000, scoped, tag = 'internal scratch']
  #allocation2 [shape = 'f32[1,32]{1,0:T(1,128)}', space=vmem, size = 0x200, scoped, tag = 'scratch operand']
  #allocation3 [shape = 'f32[8,32]{1,0:T(8,128)}', space=vmem, size = 0x1000, scoped, tag = 'scratch operand']
  #allocation4 [shape = 's32[1]{0}', space=sflag, size = 0x4, scoped, tag = 'scoped memory for attn_decoder_decode.1']
  #allocation5 [shape = 'u8[512]{0}', space=smem, size = 0x200, scoped, tag = 'prefetched SMEM operand 0']
  %s0 = inlined_call_operand.vmem [shape: s32[8], index: 0, kind: input, shape index: {}]
  %s1 = inlined_call_operand.vmem [shape: f32[64,32], index: 1, kind: input, shape index: {}]
  %s2 = inlined_call_operand.vmem [shape: f32[8,32], index: 2, kind: input, shape index: {}]
  %s3 = inlined_call_operand.vmem [shape: f32[1,32], index: 3, kind: input, shape index: {}]
  %s4 = inlined_call_operand.vmem [shape: bf16[32,128], index: 4, kind: input, shape index: {}]
  %s5 = inlined_call_operand.vmem [shape: f32[1,128], index: 5, kind: input, shape index: {}]
  %s6 = inlined_call_operand.vmem [shape: bf16[32,128], index: 6, kind: input, shape index: {}]
  %s7 = inlined_call_operand.vmem [shape: f32[1,128], index: 7, kind: input, shape index: {}]
  %s8 = inlined_call_operand.vmem [shape: bf16[64,128], index: 8, kind: input, shape index: {}]
  %s9 = inlined_call_operand.vmem [shape: f32[1,128], index: 9, kind: input, shape index: {}]
  %s10 = inlined_call_operand.vmem [shape: f32[1,32], index: 10, kind: input, shape index: {}]
  %s11 = inlined_call_operand.vmem [shape: f32[8,1,128], index: 11, kind: output, shape index: {}]
  %s12 = sld [smem:[#allocation0]]
  $region77: #{attn_decoder_decode.1} parent=0
    _
  %s14 = ssub.s32 1, %s12
  %s15 = scalar_select 0, %s14, %s12
  %s16 = sshll.u32 %s0, 4
  %s17 = int_to_ptr.vmem [resolvable:$true] %s16
  %19 = dma.vmem_to_smem %s17, 16, [#allocation5], [#allocation4]
  %20 = dma.done [#allocation4], 16
  %21 = sfence
  loop: start=0, step=1, limit=10
  $region2: #{attn_decoder_decode.1} parent=0 // loop_pre_header
    _
  $region3: #{attn_decoder_decode.1} parent=0 // loop_header
    %s23 = sphi 0, %s27
    %p24 = scmp.ge.s32.totalorder %s23, 10
    %s31 = sphi 0, %s31
    %s33 = sphi 0, %s31
    %s34 = sphi 0, %s33
    %s48 = sphi 0, %s34
    %s52 = sphi 0, %s52
    %s54 = sphi 0, %s52
    %s55 = sphi 0, %s54
    %s69 = sphi 0, %s55
    %s73 = sphi 0, %s73
    %s75 = sphi 0, %s73
    %s76 = sphi 0, %s75
    %s90 = sphi 0, %s76
    %s94 = sphi 0, %s94
    %s96 = sphi 0, %s94
    %s97 = sphi 0, %s96
    %s111 = sphi 0, %s97
    %s115 = sphi 0, %s115
    %s117 = sphi 0, %s115
    %s118 = sphi 0, %s117
    %s132 = sphi 0, %s118
    %s136 = sphi 0, %s136
    %s138 = sphi 0, %s136
    %s139 = sphi 0, %s138
    %s153 = sphi 0, %s139
    %s157 = sphi 0, %s157
    %s159 = sphi 0, %s157
    %s160 = sphi 0, %s159
    %s174 = sphi 0, %s160
    %s178 = sphi 0, %s178
    %s180 = sphi 0, %s178
    %s181 = sphi 0, %s180
    %s195 = sphi 0, %s181
    %s199 = sphi 0, %s199
    %s201 = sphi 0, %s199
    %s202 = sphi 0, %s201
    %s216 = sphi 0, %s202
    %s220 = sphi 0, %s220
    %s222 = sphi 0, %s220
    %s223 = sphi 0, %s222
    %s237 = sphi 0, %s223
    %s243 = sphi 0, %s245
    %s246 = sphi 0, %s243
    %s247 = sphi 0, %s246
    %s263 = sphi 0, %s247
  $region4: #{attn_decoder_decode.1} parent=0 // loop_header_branch
    %26 = sbr.rel (%p24) target = $region8
  $region5: #{attn_decoder_decode.1} parent=0 // loop_body
    %s28 = ssub.s32 %s23, 1
    %s29 = ssub.s32 %s23, 2
    %s30 = sadd.s32 %s23, 1
    %s32 = sadd.s32 %s31, 1
    %p35 = scmp.eq.s32.totalorder %s23, 7
    %p36 = scmp.ne.s32.totalorder %s31, %s33
    %p37 = scmp.eq.s32.totalorder %s23, 0
    %p38 = por %p36, %p37
    %p39 = scmp.ne.s32.totalorder %s31, %s33
    %p40 = scmp.eq.s32.totalorder %s28, 7
    %p41 = por %p39, %p40
    %p42 = scmp.ne.s32.totalorder %s33, %s34
    %p43 = scmp.eq.s32.totalorder %s28, 0
    %p44 = por %p42, %p43
    %p45 = scmp.ne.s32.totalorder %s33, %s34
    %p46 = scmp.eq.s32.totalorder %s29, 7
    %p47 = por %p45, %p46
    %p49 = scmp.ne.s32.totalorder %s34, %s48
    %p50 = scmp.eq.s32.totalorder %s29, 0
    %p51 = por %p49, %p50
    %s53 = sadd.s32 %s52, 1
    %p56 = scmp.eq.s32.totalorder %s23, 7
    %p57 = scmp.ne.s32.totalorder %s52, %s54
    %p58 = scmp.eq.s32.totalorder %s23, 0
    %p59 = por %p57, %p58
    %p60 = scmp.ne.s32.totalorder %s52, %s54
    %p61 = scmp.eq.s32.totalorder %s28, 7
    %p62 = por %p60, %p61
    %p63 = scmp.ne.s32.totalorder %s54, %s55
    %p64 = scmp.eq.s32.totalorder %s28, 0
    %p65 = por %p63, %p64
    %p66 = scmp.ne.s32.totalorder %s54, %s55
    %p67 = scmp.eq.s32.totalorder %s29, 7
    %p68 = por %p66, %p67
    %p70 = scmp.ne.s32.totalorder %s55, %s69
    %p71 = scmp.eq.s32.totalorder %s29, 0
    %p72 = por %p70, %p71
    %s74 = sadd.s32 %s73, 1
    %p77 = scmp.eq.s32.totalorder %s23, 7
    %p78 = scmp.ne.s32.totalorder %s73, %s75
    %p79 = scmp.eq.s32.totalorder %s23, 0
    %p80 = por %p78, %p79
    %p81 = scmp.ne.s32.totalorder %s73, %s75
    %p82 = scmp.eq.s32.totalorder %s28, 7
    %p83 = por %p81, %p82
    %p84 = scmp.ne.s32.totalorder %s75, %s76
    %p85 = scmp.eq.s32.totalorder %s28, 0
    %p86 = por %p84, %p85
    %p87 = scmp.ne.s32.totalorder %s75, %s76
    %p88 = scmp.eq.s32.totalorder %s29, 7
    %p89 = por %p87, %p88
    %p91 = scmp.ne.s32.totalorder %s76, %s90
    %p92 = scmp.eq.s32.totalorder %s29, 0
    %p93 = por %p91, %p92
    %s95 = sadd.s32 %s94, 1
    %p98 = scmp.eq.s32.totalorder %s23, 7
    %p99 = scmp.ne.s32.totalorder %s94, %s96
    %p100 = scmp.eq.s32.totalorder %s23, 0
    %p101 = por %p99, %p100
    %p102 = scmp.ne.s32.totalorder %s94, %s96
    %p103 = scmp.eq.s32.totalorder %s28, 7
    %p104 = por %p102, %p103
    %p105 = scmp.ne.s32.totalorder %s96, %s97
    %p106 = scmp.eq.s32.totalorder %s28, 0
    %p107 = por %p105, %p106
    %p108 = scmp.ne.s32.totalorder %s96, %s97
    %p109 = scmp.eq.s32.totalorder %s29, 7
    %p110 = por %p108, %p109
    %p112 = scmp.ne.s32.totalorder %s97, %s111
    %p113 = scmp.eq.s32.totalorder %s29, 0
    %p114 = por %p112, %p113
    %s116 = sadd.s32 %s115, 1
    %p119 = scmp.eq.s32.totalorder %s23, 7
    %p120 = scmp.ne.s32.totalorder %s115, %s117
    %p121 = scmp.eq.s32.totalorder %s23, 0
    %p122 = por %p120, %p121
    %p123 = scmp.ne.s32.totalorder %s115, %s117
    %p124 = scmp.eq.s32.totalorder %s28, 7
    %p125 = por %p123, %p124
    %p126 = scmp.ne.s32.totalorder %s117, %s118
    %p127 = scmp.eq.s32.totalorder %s28, 0
    %p128 = por %p126, %p127
    %p129 = scmp.ne.s32.totalorder %s117, %s118
    %p130 = scmp.eq.s32.totalorder %s29, 7
    %p131 = por %p129, %p130
    %p133 = scmp.ne.s32.totalorder %s118, %s132
    %p134 = scmp.eq.s32.totalorder %s29, 0
    %p135 = por %p133, %p134
    %s137 = sadd.s32 %s136, 1
    %p140 = scmp.eq.s32.totalorder %s23, 7
    %p141 = scmp.ne.s32.totalorder %s136, %s138
    %p142 = scmp.eq.s32.totalorder %s23, 0
    %p143 = por %p141, %p142
    %p144 = scmp.ne.s32.totalorder %s136, %s138
    %p145 = scmp.eq.s32.totalorder %s28, 7
    %p146 = por %p144, %p145
    %p147 = scmp.ne.s32.totalorder %s138, %s139
    %p148 = scmp.eq.s32.totalorder %s28, 0
    %p149 = por %p147, %p148
    %p150 = scmp.ne.s32.totalorder %s138, %s139
    %p151 = scmp.eq.s32.totalorder %s29, 7
    %p152 = por %p150, %p151
    %p154 = scmp.ne.s32.totalorder %s139, %s153
    %p155 = scmp.eq.s32.totalorder %s29, 0
    %p156 = por %p154, %p155
    %s158 = sadd.s32 %s157, 1
    %p161 = scmp.eq.s32.totalorder %s23, 7
    %p162 = scmp.ne.s32.totalorder %s157, %s159
    %p163 = scmp.eq.s32.totalorder %s23, 0
    %p164 = por %p162, %p163
    %p165 = scmp.ne.s32.totalorder %s157, %s159
    %p166 = scmp.eq.s32.totalorder %s28, 7
    %p167 = por %p165, %p166
    %p168 = scmp.ne.s32.totalorder %s159, %s160
    %p169 = scmp.eq.s32.totalorder %s28, 0
    %p170 = por %p168, %p169
    %p171 = scmp.ne.s32.totalorder %s159, %s160
    %p172 = scmp.eq.s32.totalorder %s29, 7
    %p173 = por %p171, %p172
    %p175 = scmp.ne.s32.totalorder %s160, %s174
    %p176 = scmp.eq.s32.totalorder %s29, 0
    %p177 = por %p175, %p176
    %s179 = sadd.s32 %s178, 1
    %p182 = scmp.eq.s32.totalorder %s23, 7
    %p183 = scmp.ne.s32.totalorder %s178, %s180
    %p184 = scmp.eq.s32.totalorder %s23, 0
    %p185 = por %p183, %p184
    %p186 = scmp.ne.s32.totalorder %s178, %s180
    %p187 = scmp.eq.s32.totalorder %s28, 7
    %p188 = por %p186, %p187
    %p189 = scmp.ne.s32.totalorder %s180, %s181
    %p190 = scmp.eq.s32.totalorder %s28, 0
    %p191 = por %p189, %p190
    %p192 = scmp.ne.s32.totalorder %s180, %s181
    %p193 = scmp.eq.s32.totalorder %s29, 7
    %p194 = por %p192, %p193
    %p196 = scmp.ne.s32.totalorder %s181, %s195
    %p197 = scmp.eq.s32.totalorder %s29, 0
    %p198 = por %p196, %p197
    %s200 = sadd.s32 %s199, 1
    %p203 = scmp.eq.s32.totalorder %s23, 7
    %p204 = scmp.ne.s32.totalorder %s199, %s201
    %p205 = scmp.eq.s32.totalorder %s23, 0
    %p206 = por %p204, %p205
    %p207 = scmp.ne.s32.totalorder %s199, %s201
    %p208 = scmp.eq.s32.totalorder %s28, 7
    %p209 = por %p207, %p208
    %p210 = scmp.ne.s32.totalorder %s201, %s202
    %p211 = scmp.eq.s32.totalorder %s28, 0
    %p212 = por %p210, %p211
    %p213 = scmp.ne.s32.totalorder %s201, %s202
    %p214 = scmp.eq.s32.totalorder %s29, 7
    %p215 = por %p213, %p214
    %p217 = scmp.ne.s32.totalorder %s202, %s216
    %p218 = scmp.eq.s32.totalorder %s29, 0
    %p219 = por %p217, %p218
    %s221 = sadd.s32 %s220, 1
    %p224 = scmp.eq.s32.totalorder %s23, 7
    %p225 = scmp.ne.s32.totalorder %s220, %s222
    %p226 = scmp.eq.s32.totalorder %s23, 0
    %p227 = por %p225, %p226
    %p228 = scmp.ne.s32.totalorder %s220, %s222
    %p229 = scmp.eq.s32.totalorder %s28, 7
    %p230 = por %p228, %p229
    %p231 = scmp.ne.s32.totalorder %s222, %s223
    %p232 = scmp.eq.s32.totalorder %s28, 0
    %p233 = por %p231, %p232
    %p234 = scmp.ne.s32.totalorder %s222, %s223
    %p235 = scmp.eq.s32.totalorder %s29, 7
    %p236 = por %p234, %p235
    %p238 = scmp.ne.s32.totalorder %s223, %s237
    %p239 = scmp.eq.s32.totalorder %s29, 0
    %p240 = por %p238, %p239
    %s241 = ssub.s32 %s23, %s30
    %p242 = scmp.eq.s32.totalorder %s241, 0
    %s244 = sadd.s32 %s243, 1
    %s245 = scalar_select %p242, %s243, %s244
    %p248 = pneg %p242
    %p249 = scmp.eq.s32.totalorder %s23, 7
    %p250 = por %p248, %p249
    %p251 = scmp.ne.s32.totalorder %s243, %s246
    %p252 = scmp.eq.s32.totalorder %s23, 0
    %p253 = por %p251, %p252
    %p254 = scmp.ne.s32.totalorder %s243, %s246
    %p255 = scmp.eq.s32.totalorder %s28, 7
    %p256 = por %p254, %p255
    %p257 = scmp.ne.s32.totalorder %s246, %s247
    %p258 = scmp.eq.s32.totalorder %s28, 0
    %p259 = por %p257, %p258
    %p260 = scmp.ne.s32.totalorder %s246, %s247
    %p261 = scmp.eq.s32.totalorder %s29, 7
    %p262 = por %p260, %p261
    %p264 = scmp.ne.s32.totalorder %s247, %s263
    %p265 = scmp.eq.s32.totalorder %s29, 0
    %p266 = por %p264, %p265
    %p267 = scmp.le.s32.totalorder 1, %s23
    %p268 = scmp.lt.s32.totalorder %s23, 9
    %p269 = pnand %p267, %p268
    %p270 = pneg %p269
    // Predicated region
    $region9: #{attn_decoder_decode.1} parent=5 // pred_check
      _
    $region10: #{attn_decoder_decode.1} parent=5 // pred_check_branch
      %272 = sbr.rel (%p269) target = $region12
    $region11: #{attn_decoder_decode.1} parent=5 // pred_region
      %s273 = ssub.s32 %s23, 1
      // Predicated region
      $region13: #{attn_decoder_decode.1} parent=11 // pred_check
        %p274 = pneg %p44
      $region14: #{attn_decoder_decode.1} parent=11 // pred_check_branch
        %276 = sbr.rel (%p274) target = $region16
      $region15: #{attn_decoder_decode.1} parent=11 // pred_region
        _
      $region16: #{attn_decoder_decode.1} parent=11 // pred_fallthru
        _
      // Predicated region
      $region17: #{attn_decoder_decode.1} parent=11 // pred_check
        %p277 = pneg %p65
      $region18: #{attn_decoder_decode.1} parent=11 // pred_check_branch
        %279 = sbr.rel (%p277) target = $region20
      $region19: #{attn_decoder_decode.1} parent=11 // pred_region
        _
      $region20: #{attn_decoder_decode.1} parent=11 // pred_fallthru
        _
      // Predicated region
      $region21: #{attn_decoder_decode.1} parent=11 // pred_check
        %p280 = pneg %p86
      $region22: #{attn_decoder_decode.1} parent=11 // pred_check_branch
        %282 = sbr.rel (%p280) target = $region24
      $region23: #{attn_decoder_decode.1} parent=11 // pred_region
        _
      $region24: #{attn_decoder_decode.1} parent=11 // pred_fallthru
        _
      // Predicated region
      $region25: #{attn_decoder_decode.1} parent=11 // pred_check
        %p283 = pneg %p107
      $region26: #{attn_decoder_decode.1} parent=11 // pred_check_branch
        %285 = sbr.rel (%p283) target = $region28
      $region27: #{attn_decoder_decode.1} parent=11 // pred_region
        _
      $region28: #{attn_decoder_decode.1} parent=11 // pred_fallthru
        _
      // Predicated region
      $region29: #{attn_decoder_decode.1} parent=11 // pred_check
        %p286 = pneg %p128
      $region30: #{attn_decoder_decode.1} parent=11 // pred_check_branch
        %288 = sbr.rel (%p286) target = $region32
      $region31: #{attn_decoder_decode.1} parent=11 // pred_region
        _
      $region32: #{attn_decoder_decode.1} parent=11 // pred_fallthru
        _
      // Predicated region
      $region33: #{attn_decoder_decode.1} parent=11 // pred_check
        %p289 = pneg %p149
      $region34: #{attn_decoder_decode.1} parent=11 // pred_check_branch
        %291 = sbr.rel (%p289) target = $region36
      $region35: #{attn_decoder_decode.1} parent=11 // pred_region
        _
      $region36: #{attn_decoder_decode.1} parent=11 // pred_fallthru
        _
      // Predicated region
      $region37: #{attn_decoder_decode.1} parent=11 // pred_check
        %p292 = pneg %p170
      $region38: #{attn_decoder_decode.1} parent=11 // pred_check_branch
        %294 = sbr.rel (%p292) target = $region40
      $region39: #{attn_decoder_decode.1} parent=11 // pred_region
        _
      $region40: #{attn_decoder_decode.1} parent=11 // pred_fallthru
        _
      // Predicated region
      $region41: #{attn_decoder_decode.1} parent=11 // pred_check
        %p295 = pneg %p191
      $region42: #{attn_decoder_decode.1} parent=11 // pred_check_branch
        %297 = sbr.rel (%p295) target = $region44
      $region43: #{attn_decoder_decode.1} parent=11 // pred_region
        _
      $region44: #{attn_decoder_decode.1} parent=11 // pred_fallthru
        _
      // Predicated region
      $region45: #{attn_decoder_decode.1} parent=11 // pred_check
        %p298 = pneg %p212
      $region46: #{attn_decoder_decode.1} parent=11 // pred_check_branch
        %300 = sbr.rel (%p298) target = $region48
      $region47: #{attn_decoder_decode.1} parent=11 // pred_region
        _
      $region48: #{attn_decoder_decode.1} parent=11 // pred_fallthru
        _
      // Predicated region
      $region49: #{attn_decoder_decode.1} parent=11 // pred_check
        %p301 = pneg %p233
      $region50: #{attn_decoder_decode.1} parent=11 // pred_check_branch
        %303 = sbr.rel (%p301) target = $region52
      $region51: #{attn_decoder_decode.1} parent=11 // pred_region
        _
      $region52: #{attn_decoder_decode.1} parent=11 // pred_fallthru
        _
    $region12: #{attn_decoder_decode.1} parent=5 // pred_fallthru
      _
    %p304 = scmp.lt.s32.totalorder %s23, 8
    // Predicated region
    $region53: #{attn_decoder_decode.1} parent=5 // pred_check
      %p305 = pneg %p304
    $region54: #{attn_decoder_decode.1} parent=5 // pred_check_branch
      %307 = sbr.rel (%p305) target = $region56
    $region55: #{attn_decoder_decode.1} parent=5 // pred_region
      _
    $region56: #{attn_decoder_decode.1} parent=5 // pred_fallthru
      _
    %p308 = scmp.le.s32.totalorder 1, %s23
    %p309 = scmp.lt.s32.totalorder %s23, 9
    %p310 = pnand %p308, %p309
    %p311 = pneg %p310
    // Predicated region
    $region57: #{attn_decoder_decode.1} parent=5 // pred_check
      _
    $region58: #{attn_decoder_decode.1} parent=5 // pred_check_branch
      %313 = sbr.rel (%p310) target = $region60
    $region59: #{attn_decoder_decode.1} parent=5 // pred_region
      %s314 = ssub.s32 %s23, 1
      %p315 = pneg %p44
      %p316 = pneg %p41
      %p317 = pneg %p65
      %p318 = pneg %p62
      %p319 = pneg %p86
      %p320 = pneg %p83
      %p321 = pneg %p107
      %p322 = pneg %p104
      %p323 = pneg %p128
      %p324 = pneg %p125
      %p325 = pneg %p149
      %p326 = pneg %p146
      %p327 = pneg %p170
      %p328 = pneg %p167
      %p329 = pneg %p191
      %p330 = pneg %p188
      %p331 = pneg %p212
      %p332 = pneg %p209
      %p333 = pneg %p233
      %p334 = pneg %p230
      %p335 = pneg %p259
      %p336 = pneg %p256
      %p337 = scmp.lt.s32.totalorder %s28, 7
      %s338 = scalar_select %p337, %s28, 7
      %s339 = scalar_lea.vmem %s11, %s338
      %p340 = scmp.lt.s32.totalorder %s28, 7
      %s341 = scalar_select %p340, %s28, 7
      %s342 = scalar_lea.vmem %s11, %s341
      %v343 = vld [vmem:[%s6] sm:$0xf]
      %v344 = vld [vmem:[%s6 + $0x4] sm:$0xf]
      %v345 = vld [vmem:[%s6 + $0x8] sm:$0xf]
      %v346 = vld [vmem:[%s6 + $0xc] sm:$0xf]
      %v347 = vunpack.c.l.bf16 %v343
      %v348 = vunpack.c.l.bf16 %v344
      %v349 = vunpack.c.l.bf16 %v345
      %v350 = vunpack.c.l.bf16 %v346
      %p351 = scmp.eq.s32.totalorder %s28, 0
      // Predicated region
      $region61: #{attn_decoder_decode.1} parent=59 // pred_check
        %p352 = pneg %p351
      $region62: #{attn_decoder_decode.1} parent=59 // pred_check_branch
        %354 = sbr.rel (%p352) target = $region64
      $region63: #{attn_decoder_decode.1} parent=59 // pred_region
        %v355 = vld [vmem:[%s3] sm:$0x1]
        %vm356 = vcmask 253952
        %357 = vst.msk [vmem:[#allocation2] sm:$0x1] %vm356, %v355
        %v358 = vld [vmem:[%s2] sm:$0xff]
        %v359 = vld [vmem:[%s7] sm:$0x1]
        %v361 = vlaneseq
        %v362 = vshrl.u32 %v361, 7
        %v363 = vsub.s32 0, %v362
        %v364 = vrot.slane %v359, %v363
        %vm366 = vcmask 261120
        %v368 = vsel %vm366, %v358, 0
        %370 = vmatprep.subr.mxu0 0.0
        %371 = vmatpush1.msra.mxu0 %v347
        %372 = vmatprep.subr.mxu0 0.0
        %373 = vmatpush1.msra.mxu0 %v348
        %374 = vmatprep.subr.mxu0 0.0
        %375 = vmatpush1.msra.mxu0 %v349
        %376 = vmatprep.subr.mxu0 0.0
        %377 = vmatpush1.msra.mxu0 %v350
        %378 = vmatprep.subr.mxu0 0.0
        %379 = vmatpush1.msra.mxu0 0.0
        %380 = vmatprep.subr.mxu0 0.0
        %381 = vmatpush1.msra.mxu0 0.0
        %382 = vmatprep.subr.mxu0 0.0
        %383 = vmatpush1.msra.mxu0 0.0
        %384 = vmatprep.subr.mxu0 0.0
        %385 = vmatpush1.msra.mxu0 0.0
        %386 = vmatprep.subr.mxu0 0.0
        %387 = vmatpush1.msra.mxu0 0.0
        %388 = vmatprep.subr.mxu0 0.0
        %389 = vmatpush1.msra.mxu0 0.0
        %390 = vmatprep.subr.mxu0 0.0
        %391 = vmatpush1.msra.mxu0 0.0
        %392 = vmatprep.subr.mxu0 0.0
        %393 = vmatpush1.msra.mxu0 0.0
        %394 = vmatprep.subr.mxu0 0.0
        %395 = vmatpush1.msra.mxu0 0.0
        %396 = vmatprep.subr.mxu0 0.0
        %397 = vmatpush1.msra.mxu0 0.0
        %398 = vmatprep.subr.mxu0 0.0
        %399 = vmatpush1.msra.mxu0 0.0
        %400 = vmatprep.subr.mxu0 0.0
        %401 = vmatpush1.msra.mxu0 0.0
        %402 = vmatprep.subr.mxu0 0.0
        %403 = vmatpush1.msra.mxu0 0.0
        %404 = vmatprep.subr.mxu0 0.0
        %405 = vmatpush1.msra.mxu0 0.0
        %406 = vmatprep.subr.mxu0 0.0
        %407 = vmatpush1.msra.mxu0 0.0
        %408 = vmatprep.subr.mxu0 0.0
        %409 = vmatpush1.msra.mxu0 0.0
        %410 = vmatprep.subr.mxu0 0.0
        %411 = vmatpush1.msra.mxu0 0.0
        %412 = vmatprep.subr.mxu0 0.0
        %413 = vmatpush1.msra.mxu0 0.0
        %414 = vmatprep.subr.mxu0 0.0
        %415 = vmatpush1.msra.mxu0 0.0
        %416 = vmatprep.subr.mxu0 0.0
        %417 = vmatpush1.msra.mxu0 0.0
        %418 = vmatprep.subr.mxu0 0.0
        %419 = vmatpush1.msra.mxu0 0.0
        %420 = vmatprep.subr.mxu0 0.0
        %421 = vmatpush1.msra.mxu0 0.0
        %422 = vmatprep.subr.mxu0 0.0
        %423 = vmatpush1.msra.mxu0 0.0
        %424 = vmatprep.subr.mxu0 0.0
        %425 = vmatpush1.msra.mxu0 0.0
        %426 = vmatprep.subr.mxu0 0.0
        %427 = vmatpush1.msra.mxu0 0.0
        %428 = vmatprep.subr.mxu0 0.0
        %429 = vmatpush1.msra.mxu0 0.0
        %430 = vmatprep.subr.mxu0 0.0
        %431 = vmatpush1.msra.mxu0 0.0
        %432 = vmatprep.subr.mxu0 0.0
        %433 = vmatpush1.msra.mxu0 0.0
        %434 = vmatprep.mubr.f32.mxu0 0.0
        %435 = vmatmul.mubr.f32.gmra.mrb[0].mxu0 %v368
        %v436 = vpop.f32.mrb[0].mxu0
        %v437 = vadd.f32 %v364, %v436
        %v438 = vpop.f32.mrb[0].mxu0
        %439 = vdwg.mxu0
        %440 = vst.msk [vmem:[#allocation3] sm:$0xff] %vm366, %v437
      $region64: #{attn_decoder_decode.1} parent=59 // pred_fallthru
        _
      %v441 = vld [vmem:[#allocation2] sm:$0x1]
      %s442 = sld [smem:[#allocation5 + %s28]]
      %s443 = scalar_lea.vmem %s1, %s442
      %v444 = vld [vmem:[%s443] sm:$0x1]
      %v445 = vld [vmem:[%s4] sm:$0xf]
      %v446 = vld [vmem:[%s4 + $0x4] sm:$0xf]
      %v447 = vld [vmem:[%s4 + $0x8] sm:$0xf]
      %v448 = vld [vmem:[%s4 + $0xc] sm:$0xf]
      %v449 = vunpack.c.l.bf16 %v445
      %v450 = vunpack.c.l.bf16 %v446
      %v451 = vunpack.c.l.bf16 %v447
      %v452 = vunpack.c.l.bf16 %v448
      %v453 = vld [vmem:[%s5] sm:$0x1]
      %vm454 = vcmask 261120
      %v456 = vsel %vm454, %v441, 0
      %458 = vmatprep.subr.mxu0 0.0
      %459 = vmatpush1.msra.mxu0 %v449
      %460 = vmatprep.subr.mxu0 0.0
      %461 = vmatpush1.msra.mxu0 %v450
      %462 = vmatprep.subr.mxu0 0.0
      %463 = vmatpush1.msra.mxu0 %v451
      %464 = vmatprep.subr.mxu0 0.0
      %465 = vmatpush1.msra.mxu0 %v452
      %466 = vmatprep.subr.mxu0 0.0
      %467 = vmatpush1.msra.mxu0 0.0
      %468 = vmatprep.subr.mxu0 0.0
      %469 = vmatpush1.msra.mxu0 0.0
      %470 = vmatprep.subr.mxu0 0.0
      %471 = vmatpush1.msra.mxu0 0.0
      %472 = vmatprep.subr.mxu0 0.0
      %473 = vmatpush1.msra.mxu0 0.0
      %474 = vmatprep.subr.mxu0 0.0
      %475 = vmatpush1.msra.mxu0 0.0
      %476 = vmatprep.subr.mxu0 0.0
      %477 = vmatpush1.msra.mxu0 0.0
      %478 = vmatprep.subr.mxu0 0.0
      %479 = vmatpush1.msra.mxu0 0.0
      %480 = vmatprep.subr.mxu0 0.0
      %481 = vmatpush1.msra.mxu0 0.0
      %482 = vmatprep.subr.mxu0 0.0
      %483 = vmatpush1.msra.mxu0 0.0
      %484 = vmatprep.subr.mxu0 0.0
      %485 = vmatpush1.msra.mxu0 0.0
      %486 = vmatprep.subr.mxu0 0.0
      %487 = vmatpush1.msra.mxu0 0.0
      %488 = vmatprep.subr.mxu0 0.0
      %489 = vmatpush1.msra.mxu0 0.0
      %490 = vmatprep.subr.mxu0 0.0
      %491 = vmatpush1.msra.mxu0 0.0
      %492 = vmatprep.subr.mxu0 0.0
      %493 = vmatpush1.msra.mxu0 0.0
      %494 = vmatprep.subr.mxu0 0.0
      %495 = vmatpush1.msra.mxu0 0.0
      %496 = vmatprep.subr.mxu0 0.0
      %497 = vmatpush1.msra.mxu0 0.0
      %498 = vmatprep.subr.mxu0 0.0
      %499 = vmatpush1.msra.mxu0 0.0
      %500 = vmatprep.subr.mxu0 0.0
      %501 = vmatpush1.msra.mxu0 0.0
      %502 = vmatprep.subr.mxu0 0.0
      %503 = vmatpush1.msra.mxu0 0.0
      %504 = vmatprep.subr.mxu0 0.0
      %505 = vmatpush1.msra.mxu0 0.0
      %506 = vmatprep.subr.mxu0 0.0
      %507 = vmatpush1.msra.mxu0 0.0
      %508 = vmatprep.subr.mxu0 0.0
      %509 = vmatpush1.msra.mxu0 0.0
      %510 = vmatprep.subr.mxu0 0.0
      %511 = vmatpush1.msra.mxu0 0.0
      %512 = vmatprep.subr.mxu0 0.0
      %513 = vmatpush1.msra.mxu0 0.0
      %514 = vmatprep.subr.mxu0 0.0
      %515 = vmatpush1.msra.mxu0 0.0
      %516 = vmatprep.subr.mxu0 0.0
      %517 = vmatpush1.msra.mxu0 0.0
      %518 = vmatprep.subr.mxu0 0.0
      %519 = vmatpush1.msra.mxu0 0.0
      %520 = vmatprep.subr.mxu0 0.0
      %521 = vmatpush1.msra.mxu0 0.0
      %522 = vmatprep.mubr.f32.mxu0 0.0
      %523 = vmatmul.mubr.f32.gmra.mrb[0].mxu0 %v456
      %v524 = vpop.f32.mrb[0].mxu0
      %v525 = vadd.f32 %v453, %v524
      %v526 = vpop.f32.mrb[0].mxu0
      %527 = vdwg.mxu0
      %v528 = vld [vmem:[#allocation3] sm:$0xff]
      %v529 = vlaneseq
      %v530 = vshrl.u32 %v529, 7
      %v531 = vsub.s32 0, %v530
      %v532 = vrot.slane %v525, %v531
      %v533 = vadd.f32 %v532, %v528
      %v534 = vtanh.pop %v533
      %v535 = vld [vmem:[%s10] sm:$0x1]
      %v537 = vsel %vm454, %v535, 0
      %v540 = vsel %vm454, %v534, 0
      %542 = vmatprep.subr.mxu0 0.0
      %543 = vmatpush1.xpose.msra.mxu0 %v540
      %544 = vmatprep.subr.mxu0 0.0
      %545 = vmatpush1.xpose.msra.mxu0 0.0
      %546 = vmatprep.subr.mxu0 0.0
      %547 = vmatpush1.xpose.msra.mxu0 0.0
      %548 = vmatprep.subr.mxu0 0.0
      %549 = vmatpush1.xpose.msra.mxu0 0.0
      %550 = vmatprep.subr.mxu0 0.0
      %551 = vmatpush1.xpose.msra.mxu0 0.0
      %552 = vmatprep.subr.mxu0 0.0
      %553 = vmatpush1.xpose.msra.mxu0 0.0
      %554 = vmatprep.subr.mxu0 0.0
      %555 = vmatpush1.xpose.msra.mxu0 0.0
      %556 = vmatprep.subr.mxu0 0.0
      %557 = vmatpush1.xpose.msra.mxu0 0.0
      %558 = vmatprep.subr.mxu0 0.0
      %559 = vmatpush1.xpose.msra.mxu0 0.0
      %560 = vmatprep.subr.mxu0 0.0
      %561 = vmatpush1.xpose.msra.mxu0 0.0
      %562 = vmatprep.subr.mxu0 0.0
      %563 = vmatpush1.xpose.msra.mxu0 0.0
      %564 = vmatprep.subr.mxu0 0.0
      %565 = vmatpush1.xpose.msra.mxu0 0.0
      %566 = vmatprep.subr.mxu0 0.0
      %567 = vmatpush1.xpose.msra.mxu0 0.0
      %568 = vmatprep.subr.mxu0 0.0
      %569 = vmatpush1.xpose.msra.mxu0 0.0
      %570 = vmatprep.subr.mxu0 0.0
      %571 = vmatpush1.xpose.msra.mxu0 0.0
      %572 = vmatprep.subr.mxu0 0.0
      %573 = vmatpush1.xpose.msra.mxu0 0.0
      %574 = vmatprep.subr.mxu0 0.0
      %575 = vmatpush1.xpose.msra.mxu0 0.0
      %576 = vmatprep.subr.mxu0 0.0
      %577 = vmatpush1.xpose.msra.mxu0 0.0
      %578 = vmatprep.subr.mxu0 0.0
      %579 = vmatpush1.xpose.msra.mxu0 0.0
      %580 = vmatprep.subr.mxu0 0.0
      %581 = vmatpush1.xpose.msra.mxu0 0.0
      %582 = vmatprep.subr.mxu0 0.0
      %583 = vmatpush1.xpose.msra.mxu0 0.0
      %584 = vmatprep.subr.mxu0 0.0
      %585 = vmatpush1.xpose.msra.mxu0 0.0
      %586 = vmatprep.subr.mxu0 0.0
      %587 = vmatpush1.xpose.msra.mxu0 0.0
      %588 = vmatprep.subr.mxu0 0.0
      %589 = vmatpush1.xpose.msra.mxu0 0.0
      %590 = vmatprep.subr.mxu0 0.0
      %591 = vmatpush1.xpose.msra.mxu0 0.0
      %592 = vmatprep.subr.mxu0 0.0
      %593 = vmatpush1.xpose.msra.mxu0 0.0
      %594 = vmatprep.subr.mxu0 0.0
      %595 = vmatpush1.xpose.msra.mxu0 0.0
      %596 = vmatprep.subr.mxu0 0.0
      %597 = vmatpush1.xpose.msra.mxu0 0.0
      %598 = vmatprep.subr.mxu0 0.0
      %599 = vmatpush1.xpose.msra.mxu0 0.0
      %600 = vmatprep.subr.mxu0 0.0
      %601 = vmatpush1.xpose.msra.mxu0 0.0
      %602 = vmatprep.subr.mxu0 0.0
      %603 = vmatpush1.xpose.msra.mxu0 0.0
      %604 = vmatprep.subr.mxu0 0.0
      %605 = vmatpush1.xpose.msra.mxu0 0.0
      %606 = vmatprep.mubr.f32.mxu0 0.0
      %607 = vmatmul.mubr.f32.gmra.mrb[0].mxu0 %v537
      %v608 = vpop.f32.mrb[0].mxu0
      %v609 = vadd.f32 0.0, %v608
      %v610 = vpop.f32.mrb[0].mxu0
      %611 = vdwg.mxu0
      %vm612 = vcmask 57344
      %v613 = vsel %vm612, %v609, -inf
      %614 = vmax.xlane.f32.xlu0 %v613
      %v615 = vpop.xlane.xlu0 %614
      %v616 = vsub.f32 %v609, %v615
      %v617 = vmul.f32 %v616, 1.442695
      %v618 = vpow.pop %v617
      %v619 = vsel %vm612, %v618, 0.0
      %620 = vadd.xlane.f32.xlu0 %v619
      %v621 = vpop.xlane.xlu0 %620
      %v622 = vrcp.pop %v621
      %v623 = vmul.f32 %v618, %v622
      %v624 = vld [vmem:[%s2] sm:$0xff]
      %vm625 = vcmask 64512
      %v627 = vsel %vm625, %v623, 0
      %629 = vmatprep.subr.mxu0 0.0
      %630 = vmatpush1.msra.mxu0 %v624
      %631 = vmatprep.subr.mxu0 0.0
      %632 = vmatpush1.msra.mxu0 0.0
      %633 = vmatprep.subr.mxu0 0.0
      %634 = vmatpush1.msra.mxu0 0.0
      %635 = vmatprep.subr.mxu0 0.0
      %636 = vmatpush1.msra.mxu0 0.0
      %637 = vmatprep.subr.mxu0 0.0
      %638 = vmatpush1.msra.mxu0 0.0
      %639 = vmatprep.subr.mxu0 0.0
      %640 = vmatpush1.msra.mxu0 0.0
      %641 = vmatprep.subr.mxu0 0.0
      %642 = vmatpush1.msra.mxu0 0.0
      %643 = vmatprep.subr.mxu0 0.0
      %644 = vmatpush1.msra.mxu0 0.0
      %645 = vmatprep.subr.mxu0 0.0
      %646 = vmatpush1.msra.mxu0 0.0
      %647 = vmatprep.subr.mxu0 0.0
      %648 = vmatpush1.msra.mxu0 0.0
      %649 = vmatprep.subr.mxu0 0.0
      %650 = vmatpush1.msra.mxu0 0.0
      %651 = vmatprep.subr.mxu0 0.0
      %652 = vmatpush1.msra.mxu0 0.0
      %653 = vmatprep.subr.mxu0 0.0
      %654 = vmatpush1.msra.mxu0 0.0
      %655 = vmatprep.subr.mxu0 0.0
      %656 = vmatpush1.msra.mxu0 0.0
      %657 = vmatprep.subr.mxu0 0.0
      %658 = vmatpush1.msra.mxu0 0.0
      %659 = vmatprep.subr.mxu0 0.0
      %660 = vmatpush1.msra.mxu0 0.0
      %661 = vmatprep.subr.mxu0 0.0
      %662 = vmatpush1.msra.mxu0 0.0
      %663 = vmatprep.subr.mxu0 0.0
      %664 = vmatpush1.msra.mxu0 0.0
      %665 = vmatprep.subr.mxu0 0.0
      %666 = vmatpush1.msra.mxu0 0.0
      %667 = vmatprep.subr.mxu0 0.0
      %668 = vmatpush1.msra.mxu0 0.0
      %669 = vmatprep.subr.mxu0 0.0
      %670 = vmatpush1.msra.mxu0 0.0
      %671 = vmatprep.subr.mxu0 0.0
      %672 = vmatpush1.msra.mxu0 0.0
      %673 = vmatprep.subr.mxu0 0.0
      %674 = vmatpush1.msra.mxu0 0.0
      %675 = vmatprep.subr.mxu0 0.0
      %676 = vmatpush1.msra.mxu0 0.0
      %677 = vmatprep.subr.mxu0 0.0
      %678 = vmatpush1.msra.mxu0 0.0
      %679 = vmatprep.subr.mxu0 0.0
      %680 = vmatpush1.msra.mxu0 0.0
      %681 = vmatprep.subr.mxu0 0.0
      %682 = vmatpush1.msra.mxu0 0.0
      %683 = vmatprep.subr.mxu0 0.0
      %684 = vmatpush1.msra.mxu0 0.0
      %685 = vmatprep.subr.mxu0 0.0
      %686 = vmatpush1.msra.mxu0 0.0
      %687 = vmatprep.subr.mxu0 0.0
      %688 = vmatpush1.msra.mxu0 0.0
      %689 = vmatprep.subr.mxu0 0.0
      %690 = vmatpush1.msra.mxu0 0.0
      %691 = vmatprep.subr.mxu0 0.0
      %692 = vmatpush1.msra.mxu0 0.0
      %693 = vmatprep.mubr.f32.mxu0 0.0
      %694 = vmatmul.mubr.f32.gmra.mrb[0].mxu0 %v627
      %v695 = vpop.f32.mrb[0].mxu0
      %v696 = vadd.f32 0.0, %v695
      %v697 = vpop.f32.mrb[0].mxu0
      %698 = vdwg.mxu0
      %700 = vrot.lane.b32.xlu0 %v696, 32
      %v701 = vpop.permute.xlu0 %700
      %v703 = vsel %vm454, %v444, %v701
      %v704 = vld [vmem:[%s8] sm:$0xf]
      %v705 = vld [vmem:[%s8 + $0x4] sm:$0xf]
      %v706 = vld [vmem:[%s8 + $0x8] sm:$0xf]
      %v707 = vld [vmem:[%s8 + $0xc] sm:$0xf]
      %v708 = vld [vmem:[%s8 + $0x10] sm:$0xf]
      %v709 = vld [vmem:[%s8 + $0x14] sm:$0xf]
      %v710 = vld [vmem:[%s8 + $0x18] sm:$0xf]
      %v711 = vld [vmem:[%s8 + $0x1c] sm:$0xf]
      %v712 = vunpack.c.l.bf16 %v704
      %v713 = vunpack.c.l.bf16 %v705
      %v714 = vunpack.c.l.bf16 %v706
      %v715 = vunpack.c.l.bf16 %v707
      %v716 = vunpack.c.l.bf16 %v708
      %v717 = vunpack.c.l.bf16 %v709
      %v718 = vunpack.c.l.bf16 %v710
      %v719 = vunpack.c.l.bf16 %v711
      %v720 = vld [vmem:[%s9] sm:$0x1]
      %vm721 = vcmask 523264
      %v723 = vsel %vm721, %v703, 0
      %725 = vmatprep.subr.mxu0 0.0
      %726 = vmatpush1.msra.mxu0 %v712
      %727 = vmatprep.subr.mxu0 0.0
      %728 = vmatpush1.msra.mxu0 %v713
      %729 = vmatprep.subr.mxu0 0.0
      %730 = vmatpush1.msra.mxu0 %v714
      %731 = vmatprep.subr.mxu0 0.0
      %732 = vmatpush1.msra.mxu0 %v715
      %733 = vmatprep.subr.mxu0 0.0
      %734 = vmatpush1.msra.mxu0 %v716
      %735 = vmatprep.subr.mxu0 0.0
      %736 = vmatpush1.msra.mxu0 %v717
      %737 = vmatprep.subr.mxu0 0.0
      %738 = vmatpush1.msra.mxu0 %v718
      %739 = vmatprep.subr.mxu0 0.0
      %740 = vmatpush1.msra.mxu0 %v719
      %741 = vmatprep.subr.mxu0 0.0
      %742 = vmatpush1.msra.mxu0 0.0
      %743 = vmatprep.subr.mxu0 0.0
      %744 = vmatpush1.msra.mxu0 0.0
      %745 = vmatprep.subr.mxu0 0.0
      %746 = vmatpush1.msra.mxu0 0.0
      %747 = vmatprep.subr.mxu0 0.0
      %748 = vmatpush1.msra.mxu0 0.0
      %749 = vmatprep.subr.mxu0 0.0
      %750 = vmatpush1.msra.mxu0 0.0
      %751 = vmatprep.subr.mxu0 0.0
      %752 = vmatpush1.msra.mxu0 0.0
      %753 = vmatprep.subr.mxu0 0.0
      %754 = vmatpush1.msra.mxu0 0.0
      %755 = vmatprep.subr.mxu0 0.0
      %756 = vmatpush1.msra.mxu0 0.0
      %757 = vmatprep.subr.mxu0 0.0
      %758 = vmatpush1.msra.mxu0 0.0
      %759 = vmatprep.subr.mxu0 0.0
      %760 = vmatpush1.msra.mxu0 0.0
      %761 = vmatprep.subr.mxu0 0.0
      %762 = vmatpush1.msra.mxu0 0.0
      %763 = vmatprep.subr.mxu0 0.0
      %764 = vmatpush1.msra.mxu0 0.0
      %765 = vmatprep.subr.mxu0 0.0
      %766 = vmatpush1.msra.mxu0 0.0
      %767 = vmatprep.subr.mxu0 0.0
      %768 = vmatpush1.msra.mxu0 0.0
      %769 = vmatprep.subr.mxu0 0.0
      %770 = vmatpush1.msra.mxu0 0.0
      %771 = vmatprep.subr.mxu0 0.0
      %772 = vmatpush1.msra.mxu0 0.0
      %773 = vmatprep.subr.mxu0 0.0
      %774 = vmatpush1.msra.mxu0 0.0
      %775 = vmatprep.subr.mxu0 0.0
      %776 = vmatpush1.msra.mxu0 0.0
      %777 = vmatprep.subr.mxu0 0.0
      %778 = vmatpush1.msra.mxu0 0.0
      %779 = vmatprep.subr.mxu0 0.0
      %780 = vmatpush1.msra.mxu0 0.0
      %781 = vmatprep.subr.mxu0 0.0
      %782 = vmatpush1.msra.mxu0 0.0
      %783 = vmatprep.subr.mxu0 0.0
      %784 = vmatpush1.msra.mxu0 0.0
      %785 = vmatprep.subr.mxu0 0.0
      %786 = vmatpush1.msra.mxu0 0.0
      %787 = vmatprep.subr.mxu0 0.0
      %788 = vmatpush1.msra.mxu0 0.0
      %789 = vmatprep.mubr.f32.mxu0 0.0
      %790 = vmatmul.mubr.f32.gmra.mrb[0].mxu0 %v723
      %v791 = vpop.f32.mrb[0].mxu0
      %v792 = vadd.f32 %v720, %v791
      %v793 = vpop.f32.mrb[0].mxu0
      %794 = vdwg.mxu0
      %v795 = vmax.f32 %v792, 0.0
      %v796 = vld [vmem:[%s7] sm:$0x1]
      %v798 = vsel %vm454, %v795, 0
      %800 = vmatprep.subr.mxu0 0.0
      %801 = vmatpush1.msra.mxu0 %v347
      %802 = vmatprep.subr.mxu0 0.0
      %803 = vmatpush1.msra.mxu0 %v348
      %804 = vmatprep.subr.mxu0 0.0
      %805 = vmatpush1.msra.mxu0 %v349
      %806 = vmatprep.subr.mxu0 0.0
      %807 = vmatpush1.msra.mxu0 %v350
      %808 = vmatprep.subr.mxu0 0.0
      %809 = vmatpush1.msra.mxu0 0.0
      %810 = vmatprep.subr.mxu0 0.0
      %811 = vmatpush1.msra.mxu0 0.0
      %812 = vmatprep.subr.mxu0 0.0
      %813 = vmatpush1.msra.mxu0 0.0
      %814 = vmatprep.subr.mxu0 0.0
      %815 = vmatpush1.msra.mxu0 0.0
      %816 = vmatprep.subr.mxu0 0.0
      %817 = vmatpush1.msra.mxu0 0.0
      %818 = vmatprep.subr.mxu0 0.0
      %819 = vmatpush1.msra.mxu0 0.0
      %820 = vmatprep.subr.mxu0 0.0
      %821 = vmatpush1.msra.mxu0 0.0
      %822 = vmatprep.subr.mxu0 0.0
      %823 = vmatpush1.msra.mxu0 0.0
      %824 = vmatprep.subr.mxu0 0.0
      %825 = vmatpush1.msra.mxu0 0.0
      %826 = vmatprep.subr.mxu0 0.0
      %827 = vmatpush1.msra.mxu0 0.0
      %828 = vmatprep.subr.mxu0 0.0
      %829 = vmatpush1.msra.mxu0 0.0
      %830 = vmatprep.subr.mxu0 0.0
      %831 = vmatpush1.msra.mxu0 0.0
      %832 = vmatprep.subr.mxu0 0.0
      %833 = vmatpush1.msra.mxu0 0.0
      %834 = vmatprep.subr.mxu0 0.0
      %835 = vmatpush1.msra.mxu0 0.0
      %836 = vmatprep.subr.mxu0 0.0
      %837 = vmatpush1.msra.mxu0 0.0
      %838 = vmatprep.subr.mxu0 0.0
      %839 = vmatpush1.msra.mxu0 0.0
      %840 = vmatprep.subr.mxu0 0.0
      %841 = vmatpush1.msra.mxu0 0.0
      %842 = vmatprep.subr.mxu0 0.0
      %843 = vmatpush1.msra.mxu0 0.0
      %844 = vmatprep.subr.mxu0 0.0
      %845 = vmatpush1.msra.mxu0 0.0
      %846 = vmatprep.subr.mxu0 0.0
      %847 = vmatpush1.msra.mxu0 0.0
      %848 = vmatprep.subr.mxu0 0.0
      %849 = vmatpush1.msra.mxu0 0.0
      %850 = vmatprep.subr.mxu0 0.0
      %851 = vmatpush1.msra.mxu0 0.0
      %852 = vmatprep.subr.mxu0 0.0
      %853 = vmatpush1.msra.mxu0 0.0
      %854 = vmatprep.subr.mxu0 0.0
      %855 = vmatpush1.msra.mxu0 0.0
      %856 = vmatprep.subr.mxu0 0.0
      %857 = vmatpush1.msra.mxu0 0.0
      %858 = vmatprep.subr.mxu0 0.0
      %859 = vmatpush1.msra.mxu0 0.0
      %860 = vmatprep.subr.mxu0 0.0
      %861 = vmatpush1.msra.mxu0 0.0
      %862 = vmatprep.subr.mxu0 0.0
      %863 = vmatpush1.msra.mxu0 0.0
      %864 = vmatprep.mubr.f32.mxu0 0.0
      %865 = vmatmul.mubr.f32.gmra.mrb[0].mxu0 %v798
      %v866 = vpop.f32.mrb[0].mxu0
      %v867 = vadd.f32 %v796, %v866
      %v868 = vpop.f32.mrb[0].mxu0
      %869 = vdwg.mxu0
      %v870 = vadd.f32 %v867, %v525
      %v871 = vxor.u32 %v870, 2147483648
      %v872 = vmul.f32 %v871, 1.442695
      %v873 = vpow.pop %v872
      %v874 = vadd.f32 %v873, 1.0
      %v875 = vrcp.pop %v874
      %v876 = vmul.f32 1.0, %v875
      %878 = vrot.lane.b32.xlu0 %v525, 64
      %v879 = vpop.permute.xlu0 %878
      %v881 = vmul.f32 %v876, %v879
      %883 = vrot.lane.b32.xlu0 %v881, 64
      %v884 = vpop.permute.xlu0 %883
      %v886 = vadd.f32 %v867, %v884
      %v887 = vtanh.pop %v886
      %v888 = vsub.f32 1.0, %v876
      %890 = vrot.lane.b32.xlu0 %v887, 96
      %v891 = vpop.permute.xlu0 %890
      %v893 = vmul.f32 %v888, %v891
      %v894 = vlaneseq
      %v895 = vshrl.u32 %v894, 7
      %v896 = vsub.s32 0, %v895
      %v897 = vrot.slane %v441, %v896
      %898 = vrot.lane.b32.xlu0 %v897, 64
      %v899 = vpop.permute.xlu0 %898
      %v901 = vmul.f32 %v876, %v899
      %v902 = vadd.f32 %v893, %v901
      %904 = vrot.lane.b32.xlu0 %v902, 64
      %v905 = vpop.permute.xlu0 %904
      %vm907 = vcmask 253952
      %908 = vst.msk [vmem:[#allocation2] sm:$0x1] %vm907, %v905
      %v909 = vsel %vm454, %v905, %v701
      %v910 = vld [vmem:[%s8] sm:$0xf]
      %v911 = vld [vmem:[%s8 + $0x4] sm:$0xf]
      %v912 = vld [vmem:[%s8 + $0x8] sm:$0xf]
      %v913 = vld [vmem:[%s8 + $0xc] sm:$0xf]
      %v914 = vld [vmem:[%s8 + $0x10] sm:$0xf]
      %v915 = vld [vmem:[%s8 + $0x14] sm:$0xf]
      %v916 = vld [vmem:[%s8 + $0x18] sm:$0xf]
      %v917 = vld [vmem:[%s8 + $0x1c] sm:$0xf]
      %v918 = vunpack.c.l.bf16 %v910
      %v919 = vunpack.c.l.bf16 %v911
      %v920 = vunpack.c.l.bf16 %v912
      %v921 = vunpack.c.l.bf16 %v913
      %v922 = vunpack.c.l.bf16 %v914
      %v923 = vunpack.c.l.bf16 %v915
      %v924 = vunpack.c.l.bf16 %v916
      %v925 = vunpack.c.l.bf16 %v917
      %v926 = vld [vmem:[%s9] sm:$0x1]
      %v928 = vsel %vm721, %v909, 0
      %930 = vmatprep.subr.mxu0 0.0
      %931 = vmatpush1.msra.mxu0 %v918
      %932 = vmatprep.subr.mxu0 0.0
      %933 = vmatpush1.msra.mxu0 %v919
      %934 = vmatprep.subr.mxu0 0.0
      %935 = vmatpush1.msra.mxu0 %v920
      %936 = vmatprep.subr.mxu0 0.0
      %937 = vmatpush1.msra.mxu0 %v921
      %938 = vmatprep.subr.mxu0 0.0
      %939 = vmatpush1.msra.mxu0 %v922
      %940 = vmatprep.subr.mxu0 0.0
      %941 = vmatpush1.msra.mxu0 %v923
      %942 = vmatprep.subr.mxu0 0.0
      %943 = vmatpush1.msra.mxu0 %v924
      %944 = vmatprep.subr.mxu0 0.0
      %945 = vmatpush1.msra.mxu0 %v925
      %946 = vmatprep.subr.mxu0 0.0
      %947 = vmatpush1.msra.mxu0 0.0
      %948 = vmatprep.subr.mxu0 0.0
      %949 = vmatpush1.msra.mxu0 0.0
      %950 = vmatprep.subr.mxu0 0.0
      %951 = vmatpush1.msra.mxu0 0.0
      %952 = vmatprep.subr.mxu0 0.0
      %953 = vmatpush1.msra.mxu0 0.0
      %954 = vmatprep.subr.mxu0 0.0
      %955 = vmatpush1.msra.mxu0 0.0
      %956 = vmatprep.subr.mxu0 0.0
      %957 = vmatpush1.msra.mxu0 0.0
      %958 = vmatprep.subr.mxu0 0.0
      %959 = vmatpush1.msra.mxu0 0.0
      %960 = vmatprep.subr.mxu0 0.0
      %961 = vmatpush1.msra.mxu0 0.0
      %962 = vmatprep.subr.mxu0 0.0
      %963 = vmatpush1.msra.mxu0 0.0
      %964 = vmatprep.subr.mxu0 0.0
      %965 = vmatpush1.msra.mxu0 0.0
      %966 = vmatprep.subr.mxu0 0.0
      %967 = vmatpush1.msra.mxu0 0.0
      %968 = vmatprep.subr.mxu0 0.0
      %969 = vmatpush1.msra.mxu0 0.0
      %970 = vmatprep.subr.mxu0 0.0
      %971 = vmatpush1.msra.mxu0 0.0
      %972 = vmatprep.subr.mxu0 0.0
      %973 = vmatpush1.msra.mxu0 0.0
      %974 = vmatprep.subr.mxu0 0.0
      %975 = vmatpush1.msra.mxu0 0.0
      %976 = vmatprep.subr.mxu0 0.0
      %977 = vmatpush1.msra.mxu0 0.0
      %978 = vmatprep.subr.mxu0 0.0
      %979 = vmatpush1.msra.mxu0 0.0
      %980 = vmatprep.subr.mxu0 0.0
      %981 = vmatpush1.msra.mxu0 0.0
      %982 = vmatprep.subr.mxu0 0.0
      %983 = vmatpush1.msra.mxu0 0.0
      %984 = vmatprep.subr.mxu0 0.0
      %985 = vmatpush1.msra.mxu0 0.0
      %986 = vmatprep.subr.mxu0 0.0
      %987 = vmatpush1.msra.mxu0 0.0
      %988 = vmatprep.subr.mxu0 0.0
      %989 = vmatpush1.msra.mxu0 0.0
      %990 = vmatprep.subr.mxu0 0.0
      %991 = vmatpush1.msra.mxu0 0.0
      %992 = vmatprep.subr.mxu0 0.0
      %993 = vmatpush1.msra.mxu0 0.0
      %994 = vmatprep.mubr.f32.mxu0 0.0
      %995 = vmatmul.mubr.f32.gmra.mrb[0].mxu0 %v928
      %v996 = vpop.f32.mrb[0].mxu0
      %v997 = vadd.f32 %v926, %v996
      %v998 = vpop.f32.mrb[0].mxu0
      %999 = vdwg.mxu0
      %vm1000 = vcmask 778496
      %v1001 = vsel %vm1000, %v997, -inf
      %1002 = vmax.xlane.f32.xlu0 %v1001
      %v1003 = vpop.xlane.xlu0 %1002
      %v1004 = vsub.f32 %v997, %v1003
      %v1005 = vmul.f32 %v1004, 1.442695
      %v1006 = vpow.pop %v1005
      %1008 = vrot.lane.b32.xlu0 %v1006, 96
      %v1009 = vpop.permute.xlu0 %1008
      %vm1011 = vcmask 516096
      %v1012 = vsel %vm1011, %v1009, 0.0
      %1013 = vadd.xlane.f32.xlu0 %v1012
      %v1014 = vpop.xlane.xlu0 %1013
      %v1015 = vlog2.pop %v1014
      %v1016 = vmul.f32 %v1015, 0.6931472
      %v1017 = vsub.f32 %v1004, %v1016
      %1019 = vrot.lane.b32.xlu0 %v1017, 96
      %v1020 = vpop.permute.xlu0 %1019
      %1022 = vrot.lane.b32.xlu0 %v623, 96
      %v1023 = vpop.permute.xlu0 %1022
      %v1025 = vsel %vm721, %v1020, %v902
      %vm1026 = vcmask 785408
      %v1027 = vsel %vm1026, %v1025, %v1023
      %vm1028 = vcmask 850944
      %v1029 = vsel %vm1028, %v1027, 0.0
      %1030 = vst [vmem:[%s342] sm:$0x1] %v1029
      %p1031 = scmp.lt.s32.totalorder %s28, 7
      %s1032 = scalar_select %p1031, %s28, 7
      %s1033 = scalar_lea.vmem %s11, %s1032
      // Predicated region
      $region65: #{attn_decoder_decode.1} parent=59 // pred_check
        %p1034 = pneg %p256
      $region66: #{attn_decoder_decode.1} parent=59 // pred_check_branch
        %1036 = sbr.rel (%p1034) target = $region68
      $region67: #{attn_decoder_decode.1} parent=59 // pred_region
        _
      $region68: #{attn_decoder_decode.1} parent=59 // pred_fallthru
        _
    $region60: #{attn_decoder_decode.1} parent=5 // pred_fallthru
      _
    %p1037 = scmp.le.s32.totalorder 2, %s23
    // Predicated region
    $region69: #{attn_decoder_decode.1} parent=5 // pred_check
      %p1038 = pneg %p1037
    $region70: #{attn_decoder_decode.1} parent=5 // pred_check_branch
      %1040 = sbr.rel (%p1038) target = $region72
    $region71: #{attn_decoder_decode.1} parent=5 // pred_region
      %s1041 = ssub.s32 %s23, 2
      // Predicated region
      $region73: #{attn_decoder_decode.1} parent=71 // pred_check
        %p1042 = pneg %p262
      $region74: #{attn_decoder_decode.1} parent=71 // pred_check_branch
        %1044 = sbr.rel (%p1042) target = $region76
      $region75: #{attn_decoder_decode.1} parent=71 // pred_region
        %p1045 = scmp.lt.s32.totalorder %s29, 7
        %s1046 = scalar_select %p1045, %s29, 7
        %s1047 = scalar_lea.vmem %s11, %s1046
      $region76: #{attn_decoder_decode.1} parent=71 // pred_fallthru
        _
    $region72: #{attn_decoder_decode.1} parent=5 // pred_fallthru
      _
  $region6: #{attn_decoder_decode.1} parent=0 // loop_footer
    %s27 = sadd.s32 1, %s23
  $region7: #{attn_decoder_decode.1} parent=0 // loop_footer_branch
    %22 = sbr.rel target = $region3
  $region8: #{attn_decoder_decode.1} parent=0 // loop_exit
    _

</llo_original>
